<compile_context>
chip_gen: v6e
topology: v6e:2x2x1
jax: 0.10.0
libtpu: 0.0.40
codegen_flags: <defaults>
</compile_context>

<pallas_src>
import functools

import jax
import jax.numpy as jnp
import numpy as np
from jax.experimental import pallas as pl
from jax.experimental.pallas import tpu as pltpu


def _pad_to(v, m):
    return ((v + m - 1) // m) * m


def _adaptive_bins(n, t_len):
    """PyTorch adaptive-pool bin boundaries along the temporal axis."""
    return [((i * t_len) // n, -(-((i + 1) * t_len) // n)) for i in range(n)]


def _make_plan(out_side, t_len):
    """Static per-column plan.

    Returns (fin_bins, plan, all_bins):
      fin_bins : bins of the finest pyramid level (n = max(out_side)),
      plan[j]  : ("combine", lo, hi) -> max over fin_bins[lo..hi], or
                 ("raw", t0, t1)     -> reduce x[:, t0*hw:t1*hw] directly,
      all_bins : (t0, t1) per output column (avg weights / divisors).
    """
    fin_n = max(out_side)
    fin_bins = _adaptive_bins(fin_n, t_len)
    starts = {t0: k for k, (t0, _) in enumerate(fin_bins)}
    ends = {t1: k for k, (_, t1) in enumerate(fin_bins)}
    plan, all_bins = [], []
    for n in out_side:
        for (t0, t1) in _adaptive_bins(n, t_len):
            all_bins.append((t0, t1))
            if t0 in starts and t1 in ends and starts[t0] <= ends[t1]:
                plan.append(("combine", starts[t0], ends[t1]))
            else:
                plan.append(("raw", t0, t1))
    return tuple(fin_bins), tuple(plan), tuple(all_bins)


def _tps2p_kernel(x_ref, w_ref, o_ref, *, fin_bins, plan, inv_cnts, hw):
    """x_ref: (tile_bc, T*HW).  w_ref: (T*HW, S_pad).  o_ref: (tile_bc, S)."""
    # ---- adaptive AVG pyramid: one dense matmul on the (otherwise idle) MXU.
    # w is a 0/1 bin-indicator matrix, so the matmul yields exact per-bin sums
    # with f32 accumulation; the 1/bin_count scale is applied per column.
    bin_sums = jnp.dot(x_ref[...], w_ref[...],
                       preferred_element_type=jnp.float32)      # (tile_bc, S_pad)

    # ---- adaptive MAX pyramid: finest-level bins once (wide contiguous lane
    # slices, kept in the input dtype), coarser bins combined from partials.
    fin_max = [jnp.max(x_ref[:, t0 * hw:t1 * hw], axis=-1, keepdims=True)
               for (t0, t1) in fin_bins]

    # ---- assemble + store each pyramid column directly (no concat).
    for j, entry in enumerate(plan):
        if entry[0] == "combine":
            _, lo, hi = entry
            mx = fin_max[lo]
            for k in range(lo + 1, hi + 1):
                mx = jnp.maximum(mx, fin_max[k])
        else:                       # bin boundaries do not nest in finest level
            _, t0, t1 = entry
            mx = jnp.max(x_ref[:, t0 * hw:t1 * hw], axis=-1, keepdims=True)
        col = bin_sums[:, j:j + 1] * inv_cnts[j] + mx.astype(jnp.float32)
        o_ref[:, j:j + 1] = col.astype(o_ref.dtype)


def _vmem_limit_bytes():
    """Generation-aware scoped-VMEM limit (conservative when unknown)."""
    kind = ""
    try:
        kind = jax.devices()[0].device_kind.lower()
    except Exception:
        pass
    # v5e / v6e have 128 MiB of VMEM per TensorCore; v7x only has 64 MiB, so
    # fall back to a limit that is safe on every generation.
    if "v5" in kind or "v6" in kind:
        return 80 * 1024 * 1024
    return 48 * 1024 * 1024


def temporal_pyramid_simplify2_pool3d(x, out_side):
    """x: [B, C, T, H, W].  Returns [B, C, sum(out_side), 1, 1]."""
    B, C, T, H, W = x.shape
    BC, HW = B * C, H * W
    THW = T * HW
    S = sum(out_side)
    S_pad = _pad_to(S, 128)
    itemsize = x.dtype.itemsize

    fin_bins, plan, all_bins = _make_plan(tuple(out_side), T)
    inv_cnts = tuple(1.0 / ((t1 - t0) * HW) for (t0, t1) in all_bins)

    # Lane-dense layout: temporal bins become contiguous static lane slices.
    x2 = x.reshape(BC, THW)

    # 0/1 bin-indicator weights for the MXU avg path (exact in any dtype).
    w_np = np.zeros((THW, S_pad), dtype=np.float32)
    for j, (t0, t1) in enumerate(all_bins):
        w_np[t0 * HW:t1 * HW, j] = 1.0
    w = jnp.asarray(w_np, dtype=x.dtype)

    # ---- VMEM-budget-driven BC tile (the reduced THW axis is never tiled).
    vmem_limit = _vmem_limit_bytes()
    lane_thw = _pad_to(THW, 128)
    sub = max(8, 32 // itemsize)                   # sublane packing multiple
    w_block_bytes = 2 * _pad_to(THW, sub) * S_pad * itemsize
    # Per-row VMEM: double-buffered input + double-buffered (lane-padded)
    # output block + the f32 bin_sums intermediate.
    per_row = 2 * lane_thw * itemsize + 2 * S_pad * itemsize + S_pad * 4 + 64
    avail = vmem_limit - w_block_bytes - vmem_limit // 4   # headroom for scratch
    budget_rows = max(sub, min(avail // per_row, 2048) // sub * sub)

    if budget_rows >= BC:
        if BC >= 2 * sub:
            # Split even when a single block would fit so both v7x
            # TensorCores get a grid step on the "parallel" BC axis.
            tile_bc = min(BC, _pad_to(-(-BC // 2), sub))
        else:
            tile_bc = BC
    else:
        tile_bc = budget_rows
    grid = (pl.cdiv(BC, tile_bc),)

    kernel = functools.partial(
        _tps2p_kernel, fin_bins=fin_bins, plan=plan, inv_cnts=inv_cnts, hw=HW)

    cost = pl.CostEstimate(
        flops=2 * BC * THW * len(out_side) + BC * THW,
        transcendentals=0,
        bytes_accessed=(BC * THW + THW * S_pad + BC * S) * itemsize,
    )

    out = pl.pallas_call(
        kernel,
        out_shape=jax.ShapeDtypeStruct((BC, S), x.dtype),
        grid=grid,
        in_specs=[
            pl.BlockSpec((tile_bc, THW), lambda i: (i, 0)),
            pl.BlockSpec((THW, S_pad), lambda i: (0, 0)),   # resident bin weights
        ],
        out_specs=pl.BlockSpec((tile_bc, S), lambda i: (i, 0)),
        compiler_params=pltpu.CompilerParams(
            dimension_semantics=("parallel",),
            vmem_limit_bytes=vmem_limit),
        cost_estimate=cost,
    )(x2, w)

    return out.reshape(B, C, S, 1, 1)


def _reference(x, out_side):
    """Pure-JAX reference: AdaptiveAvgPool3d((n,1,1)) + AdaptiveMaxPool3d((n,1,1))."""
    B, C, T, H, W = x.shape
    xf = x.astype(jnp.float32)
    sp_max = jnp.max(xf, axis=(-1, -2))                # (B, C, T)
    sp_sum = jnp.sum(xf, axis=(-1, -2))                # (B, C, T)
    pieces = []
    for n in out_side:
        for (t0, t1) in _adaptive_bins(n, T):
            mx = jnp.max(sp_max[:, :, t0:t1], axis=-1)
            av = jnp.sum(sp_sum[:, :, t0:t1], axis=-1) / ((t1 - t0) * H * W)
            pieces.append(av + mx)
    out = jnp.stack(pieces, axis=-1).astype(x.dtype)
    return out.reshape(B, C, sum(out_side), 1, 1)


if __name__ == "__main__":
    key = jax.random.PRNGKey(0)
    B, C, T, H, W = 2, 4, 16, 4, 4
    out_side = (1, 2, 4)

    x = jax.random.normal(key, (B, C, T, H, W), dtype=jnp.float32)

    y = jax.block_until_ready(temporal_pyramid_simplify2_pool3d(x, out_side))
    y_ref = _reference(x, out_side)

    assert y.shape == (B, C, sum(out_side), 1, 1), y.shape
    assert jnp.allclose(y, y_ref, atol=1e-4, rtol=1e-4), float(
        jnp.max(jnp.abs(y.astype(jnp.float32) - y_ref.astype(jnp.float32))))

    print("KERNEL_OK")
</pallas_src>

<mosaic_0001>
module attributes {stable_mosaic.version = 11 : i64} {
  func.func @_tps2p_kernel(%arg0: i32, %arg1: memref<8x256xf32, #tpu.memory_space<vmem>>, %arg2: memref<256x128xf32, #tpu.memory_space<vmem>>, %arg3: memref<8x7xf32, #tpu.memory_space<vmem>>) attributes {dimension_semantics = [#tpu.dimension_semantics<parallel>], iteration_bounds = array<i64: 1>, scalar_prefetch = 0 : i64, scratch_operands = 0 : i64, tpu.core_type = #tpu.core_type<tc>, window_params = [{transform_indices = @transform_0, window_bounds = array<i64: 8, 256>}, {pipeline_mode = #tpu.pipeline_mode<synchronous>, transform_indices = @transform_1, window_bounds = array<i64: 256, 128>}, {transform_indices = @transform_2, window_bounds = array<i64: 8, 7>}]} {
    %c0 = arith.constant 0 : index
    %c0_0 = arith.constant 0 : index
    %0 = vector.load %arg1[%c0, %c0_0] : memref<8x256xf32, #tpu.memory_space<vmem>>, vector<8x256xf32>
    %c0_1 = arith.constant 0 : index
    %c0_2 = arith.constant 0 : index
    %1 = vector.load %arg2[%c0_1, %c0_2] : memref<256x128xf32, #tpu.memory_space<vmem>>, vector<256x128xf32>
    %cst = arith.constant dense<0.000000e+00> : vector<8x128xf32>
    %2 = tpu.matmul %0, %1, %cst {dimension_numbers = #tpu.dot_dimension_numbers<[1], [0], [0], [1], [0, 0, 1, 1], [], []>} : vector<8x256xf32>, vector<256x128xf32>, vector<8x128xf32> -> vector<8x128xf32>
    %c0_3 = arith.constant 0 : index
    %c0_4 = arith.constant 0 : index
    %3 = vector.load %arg1[%c0_3, %c0_4] : memref<8x256xf32, #tpu.memory_space<vmem>>, vector<8x64xf32>
    %cst_5 = arith.constant dense<0xFF800000> : vector<8xf32>
    %4 = vector.multi_reduction <maximumf>, %3, %cst_5 [1] : vector<8x64xf32> to vector<8xf32>
    %5 = vector.shape_cast %4 : vector<8xf32> to vector<8x1xf32>
    %c0_6 = arith.constant 0 : index
    %c64 = arith.constant 64 : index
    %6 = vector.load %arg1[%c0_6, %c64] : memref<8x256xf32, #tpu.memory_space<vmem>>, vector<8x64xf32>
    %cst_7 = arith.constant dense<0xFF800000> : vector<8xf32>
    %7 = vector.multi_reduction <maximumf>, %6, %cst_7 [1] : vector<8x64xf32> to vector<8xf32>
    %8 = vector.shape_cast %7 : vector<8xf32> to vector<8x1xf32>
    %c0_8 = arith.constant 0 : index
    %c128 = arith.constant 128 : index
    %9 = vector.load %arg1[%c0_8, %c128] : memref<8x256xf32, #tpu.memory_space<vmem>>, vector<8x64xf32>
    %cst_9 = arith.constant dense<0xFF800000> : vector<8xf32>
    %10 = vector.multi_reduction <maximumf>, %9, %cst_9 [1] : vector<8x64xf32> to vector<8xf32>
    %11 = vector.shape_cast %10 : vector<8xf32> to vector<8x1xf32>
    %c0_10 = arith.constant 0 : index
    %c192 = arith.constant 192 : index
    %12 = vector.load %arg1[%c0_10, %c192] : memref<8x256xf32, #tpu.memory_space<vmem>>, vector<8x64xf32>
    %cst_11 = arith.constant dense<0xFF800000> : vector<8xf32>
    %13 = vector.multi_reduction <maximumf>, %12, %cst_11 [1] : vector<8x64xf32> to vector<8xf32>
    %14 = vector.shape_cast %13 : vector<8xf32> to vector<8x1xf32>
    %15 = arith.maximumf %5, %8 : vector<8x1xf32>
    %16 = arith.maximumf %15, %11 : vector<8x1xf32>
    %17 = arith.maximumf %16, %14 : vector<8x1xf32>
    %18 = vector.extract_strided_slice %2 {offsets = [0, 0], sizes = [8, 1], strides = [1, 1]} : vector<8x128xf32> to vector<8x1xf32>
    %cst_12 = arith.constant 3.906250e-03 : f32
    %19 = vector.broadcast %cst_12 : f32 to vector<8x1xf32>
    %20 = arith.mulf %18, %19 : vector<8x1xf32>
    %21 = arith.addf %20, %17 : vector<8x1xf32>
    %c0_13 = arith.constant 0 : index
    %c0_14 = arith.constant 0 : index
    %22 = vector.load %arg3[%c0_13, %c0_14] : memref<8x7xf32, #tpu.memory_space<vmem>>, vector<8x1xf32>
    tpu.vector_store %arg3[%c0_13, %c0_14], %21 {strides = array<i32>} : memref<8x7xf32, #tpu.memory_space<vmem>>, vector<8x1xf32>,
    %23 = arith.maximumf %5, %8 : vector<8x1xf32>
    %24 = vector.extract_strided_slice %2 {offsets = [0, 1], sizes = [8, 1], strides = [1, 1]} : vector<8x128xf32> to vector<8x1xf32>
    %cst_15 = arith.constant 7.812500e-03 : f32
    %25 = vector.broadcast %cst_15 : f32 to vector<8x1xf32>
    %26 = arith.mulf %24, %25 : vector<8x1xf32>
    %27 = arith.addf %26, %23 : vector<8x1xf32>
    %c0_16 = arith.constant 0 : index
    %c1 = arith.constant 1 : index
    %28 = vector.load %arg3[%c0_16, %c1] : memref<8x7xf32, #tpu.memory_space<vmem>>, vector<8x1xf32>
    tpu.vector_store %arg3[%c0_16, %c1], %27 {strides = array<i32>} : memref<8x7xf32, #tpu.memory_space<vmem>>, vector<8x1xf32>,
    %29 = arith.maximumf %11, %14 : vector<8x1xf32>
    %30 = vector.extract_strided_slice %2 {offsets = [0, 2], sizes = [8, 1], strides = [1, 1]} : vector<8x128xf32> to vector<8x1xf32>
    %cst_17 = arith.constant 7.812500e-03 : f32
    %31 = vector.broadcast %cst_17 : f32 to vector<8x1xf32>
    %32 = arith.mulf %30, %31 : vector<8x1xf32>
    %33 = arith.addf %32, %29 : vector<8x1xf32>
    %c0_18 = arith.constant 0 : index
    %c2 = arith.constant 2 : index
    %34 = vector.load %arg3[%c0_18, %c2] : memref<8x7xf32, #tpu.memory_space<vmem>>, vector<8x1xf32>
    tpu.vector_store %arg3[%c0_18, %c2], %33 {strides = array<i32>} : memref<8x7xf32, #tpu.memory_space<vmem>>, vector<8x1xf32>,
    %35 = vector.extract_strided_slice %2 {offsets = [0, 3], sizes = [8, 1], strides = [1, 1]} : vector<8x128xf32> to vector<8x1xf32>
    %cst_19 = arith.constant 1.562500e-02 : f32
    %36 = vector.broadcast %cst_19 : f32 to vector<8x1xf32>
    %37 = arith.mulf %35, %36 : vector<8x1xf32>
    %38 = arith.addf %37, %5 : vector<8x1xf32>
    %c0_20 = arith.constant 0 : index
    %c3 = arith.constant 3 : index
    %39 = vector.load %arg3[%c0_20, %c3] : memref<8x7xf32, #tpu.memory_space<vmem>>, vector<8x1xf32>
    tpu.vector_store %arg3[%c0_20, %c3], %38 {strides = array<i32>} : memref<8x7xf32, #tpu.memory_space<vmem>>, vector<8x1xf32>,
    %40 = vector.extract_strided_slice %2 {offsets = [0, 4], sizes = [8, 1], strides = [1, 1]} : vector<8x128xf32> to vector<8x1xf32>
    %cst_21 = arith.constant 1.562500e-02 : f32
    %41 = vector.broadcast %cst_21 : f32 to vector<8x1xf32>
    %42 = arith.mulf %40, %41 : vector<8x1xf32>
    %43 = arith.addf %42, %8 : vector<8x1xf32>
    %c0_22 = arith.constant 0 : index
    %c4 = arith.constant 4 : index
    %44 = vector.load %arg3[%c0_22, %c4] : memref<8x7xf32, #tpu.memory_space<vmem>>, vector<8x1xf32>
    tpu.vector_store %arg3[%c0_22, %c4], %43 {strides = array<i32>} : memref<8x7xf32, #tpu.memory_space<vmem>>, vector<8x1xf32>,
    %45 = vector.extract_strided_slice %2 {offsets = [0, 5], sizes = [8, 1], strides = [1, 1]} : vector<8x128xf32> to vector<8x1xf32>
    %cst_23 = arith.constant 1.562500e-02 : f32
    %46 = vector.broadcast %cst_23 : f32 to vector<8x1xf32>
    %47 = arith.mulf %45, %46 : vector<8x1xf32>
    %48 = arith.addf %47, %11 : vector<8x1xf32>
    %c0_24 = arith.constant 0 : index
    %c5 = arith.constant 5 : index
    %49 = vector.load %arg3[%c0_24, %c5] : memref<8x7xf32, #tpu.memory_space<vmem>>, vector<8x1xf32>
    tpu.vector_store %arg3[%c0_24, %c5], %48 {strides = array<i32>} : memref<8x7xf32, #tpu.memory_space<vmem>>, vector<8x1xf32>,
    %50 = vector.extract_strided_slice %2 {offsets = [0, 6], sizes = [8, 1], strides = [1, 1]} : vector<8x128xf32> to vector<8x1xf32>
    %cst_25 = arith.constant 1.562500e-02 : f32
    %51 = vector.broadcast %cst_25 : f32 to vector<8x1xf32>
    %52 = arith.mulf %50, %51 : vector<8x1xf32>
    %53 = arith.addf %52, %14 : vector<8x1xf32>
    %c0_26 = arith.constant 0 : index
    %c6 = arith.constant 6 : index
    %54 = vector.load %arg3[%c0_26, %c6] : memref<8x7xf32, #tpu.memory_space<vmem>>, vector<8x1xf32>
    tpu.vector_store %arg3[%c0_26, %c6], %53 {strides = array<i32>} : memref<8x7xf32, #tpu.memory_space<vmem>>, vector<8x1xf32>,
    return
  }
  func.func @transform_0(%arg0: i32) -> (i32, i32) {
    %c0_i32 = arith.constant 0 : i32
    %c0_i32_0 = arith.constant 0 : i32
    return %arg0, %c0_i32 : i32, i32
  }
  func.func @transform_1(%arg0: i32) -> (i32, i32) {
    %c0_i32 = arith.constant 0 : i32
    %c0_i32_0 = arith.constant 0 : i32
    %c0_i32_1 = arith.constant 0 : i32
    return %c0_i32, %c0_i32_0 : i32, i32
  }
  func.func @transform_2(%arg0: i32) -> (i32, i32) {
    %c0_i32 = arith.constant 0 : i32
    %c0_i32_0 = arith.constant 0 : i32
    return %arg0, %c0_i32 : i32, i32
  }
}

</mosaic_0001>

<llo_original>
// kernel: tpu_custom_call.1
$region0: #{tpu_custom_call.1}
  #allocation0 [shape = 'u32[]', space=smem, size = 0x4, offset = 0x4, fixed_abs, tag = 'smem constant byte address 0x4 - core index']
  #allocation1 [shape = 'u32[144,128]{1,0:T(1,128)}', space=vmem, size = 0x12000, scoped, tag = 'internal scratch']
  %s0 = inlined_call_operand.hbm [shape: f32[8,256], index: 0, kind: input, shape index: {}]
  %s1 = inlined_call_operand.hbm [shape: f32[256,128], index: 1, kind: input, shape index: {}]
  %s2 = inlined_call_operand.hbm [shape: f32[8,7], index: 2, kind: output, shape index: {}]
  %s3 = sld [smem:[#allocation0]]
  $region26: #{tpu_custom_call.1} parent=0
    _
  %s5 = ssub.s32 1, %s3
  %s6 = scalar_select 0, %s5, %s3
  $region1: #{tpu_custom_call.1} parent=0
    #allocation2 [shape = 'u8[8192]{0}', space=vmem, size = 0x2000, scoped, tag = 'input window, operand 0, single buffered']
    #allocation3 [shape = 's32[1]{0}', space=sflag, size = 0x4, scoped, tag = 'scoped memory for tpu_custom_call.1']
    #allocation4 [shape = 's32[1]{0}', space=sflag, size = 0x4, scoped, tag = 'scoped memory for tpu_custom_call.1']
    #allocation5 [shape = 'u8[131072]{0}', space=vmem, size = 0x20000, scoped, tag = 'input window, operand 1, single buffered']
    #allocation6 [shape = 's32[1]{0}', space=sflag, size = 0x4, scoped, tag = 'scoped memory for tpu_custom_call.1']
    #allocation7 [shape = 'u8[4096]{0}', space=vmem, size = 0x1000, scoped, tag = 'output window, operand 0, single buffered']
    %7 = vsyncpa [#allocation3], 0
    %8 = vsyncpa [#allocation6], 0
    %9 = vsyncpa [#allocation4], 0
    // Predicated region
    $region2: #{tpu_custom_call.1} parent=1 // pred_check
      _
    $region3: #{tpu_custom_call.1} parent=1 // pred_check_branch
      %11 = sbr.rel (0) target = $region5
    $region4: #{tpu_custom_call.1} parent=1 // pred_region
      %s13 = ssub.s32 256, 256
      %14 = vsyncadd [#allocation3], %s13
      %s16 = sshll.u32 [#allocation2], 4
      %s17 = int_to_ptr.vmem [resolvable:$true] %s16
      %19 = dma.hbm_to_vmem [thread:$0]  %s0, 256, %s17, [#allocation3]
    $region5: #{tpu_custom_call.1} parent=1 // pred_fallthru
      _
    // Predicated region
    $region6: #{tpu_custom_call.1} parent=1 // pred_check
      _
    $region7: #{tpu_custom_call.1} parent=1 // pred_check_branch
      %21 = sbr.rel (0) target = $region9
    $region8: #{tpu_custom_call.1} parent=1 // pred_region
      %s23 = ssub.s32 4096, 4096
      %24 = vsyncadd [#allocation6], %s23
      %s25 = sshll.u32 [#allocation5], 4
      %s26 = int_to_ptr.vmem [resolvable:$true] %s25
      %31 = dma.hbm_to_vmem [thread:$0]  %s1, 4096, %s26, [#allocation6], 128, 128, 8
    $region9: #{tpu_custom_call.1} parent=1 // pred_fallthru
      _
    // Predicated region
    $region10: #{tpu_custom_call.1} parent=1 // pred_check
      _
    $region11: #{tpu_custom_call.1} parent=1 // pred_check_branch
      %33 = sbr.rel (0) target = $region13
    $region12: #{tpu_custom_call.1} parent=1 // pred_region
      %34 = dma.done [#allocation3], 256
    $region13: #{tpu_custom_call.1} parent=1 // pred_fallthru
      _
    // Predicated region
    $region14: #{tpu_custom_call.1} parent=1 // pred_check
      _
    $region15: #{tpu_custom_call.1} parent=1 // pred_check_branch
      %36 = sbr.rel (0) target = $region17
    $region16: #{tpu_custom_call.1} parent=1 // pred_region
      %37 = dma.done [#allocation6], 4096
    $region17: #{tpu_custom_call.1} parent=1 // pred_fallthru
      _
    %v38 = vld [vmem:[#allocation2] sm:$0xff]
    %v39 = vld [vmem:[#allocation2 + $0x8] sm:$0xff]
    %v40 = vld [vmem:[#allocation5] sm:$0xff]
    %v41 = vld [vmem:[#allocation5 + $0x8] sm:$0xff]
    %v42 = vld [vmem:[#allocation5 + $0x10] sm:$0xff]
    %v43 = vld [vmem:[#allocation5 + $0x18] sm:$0xff]
    %v44 = vld [vmem:[#allocation5 + $0x20] sm:$0xff]
    %v45 = vld [vmem:[#allocation5 + $0x28] sm:$0xff]
    %v46 = vld [vmem:[#allocation5 + $0x30] sm:$0xff]
    %v47 = vld [vmem:[#allocation5 + $0x38] sm:$0xff]
    %v48 = vld [vmem:[#allocation5 + $0x40] sm:$0xff]
    %v49 = vld [vmem:[#allocation5 + $0x48] sm:$0xff]
    %v50 = vld [vmem:[#allocation5 + $0x50] sm:$0xff]
    %v51 = vld [vmem:[#allocation5 + $0x58] sm:$0xff]
    %v52 = vld [vmem:[#allocation5 + $0x60] sm:$0xff]
    %v53 = vld [vmem:[#allocation5 + $0x68] sm:$0xff]
    %v54 = vld [vmem:[#allocation5 + $0x70] sm:$0xff]
    %v55 = vld [vmem:[#allocation5 + $0x78] sm:$0xff]
    %v56 = vld [vmem:[#allocation5 + $0x80] sm:$0xff]
    %v57 = vld [vmem:[#allocation5 + $0x88] sm:$0xff]
    %v58 = vld [vmem:[#allocation5 + $0x90] sm:$0xff]
    %v59 = vld [vmem:[#allocation5 + $0x98] sm:$0xff]
    %v60 = vld [vmem:[#allocation5 + $0xa0] sm:$0xff]
    %v61 = vld [vmem:[#allocation5 + $0xa8] sm:$0xff]
    %v62 = vld [vmem:[#allocation5 + $0xb0] sm:$0xff]
    %v63 = vld [vmem:[#allocation5 + $0xb8] sm:$0xff]
    %v64 = vld [vmem:[#allocation5 + $0xc0] sm:$0xff]
    %v65 = vld [vmem:[#allocation5 + $0xc8] sm:$0xff]
    %v66 = vld [vmem:[#allocation5 + $0xd0] sm:$0xff]
    %v67 = vld [vmem:[#allocation5 + $0xd8] sm:$0xff]
    %v68 = vld [vmem:[#allocation5 + $0xe0] sm:$0xff]
    %v69 = vld [vmem:[#allocation5 + $0xe8] sm:$0xff]
    %v70 = vld [vmem:[#allocation5 + $0xf0] sm:$0xff]
    %v71 = vld [vmem:[#allocation5 + $0xf8] sm:$0xff]
    %72 = vmatprep.subr.mxu0 0.0
    %73 = vmatpush1.msra.mxu0 %v55
    %74 = vmatprep.subr.mxu0 0.0
    %75 = vmatpush1.msra.mxu0 %v54
    %76 = vmatprep.subr.mxu0 0.0
    %77 = vmatpush1.msra.mxu0 %v53
    %78 = vmatprep.subr.mxu0 0.0
    %79 = vmatpush1.msra.mxu0 %v52
    %80 = vmatprep.subr.mxu0 0.0
    %81 = vmatpush1.msra.mxu0 %v51
    %82 = vmatprep.subr.mxu0 0.0
    %83 = vmatpush1.msra.mxu0 %v50
    %84 = vmatprep.subr.mxu0 0.0
    %85 = vmatpush1.msra.mxu0 %v49
    %86 = vmatprep.subr.mxu0 0.0
    %87 = vmatpush1.msra.mxu0 %v48
    %88 = vmatprep.subr.mxu0 0.0
    %89 = vmatpush1.msra.mxu0 %v47
    %90 = vmatprep.subr.mxu0 0.0
    %91 = vmatpush1.msra.mxu0 %v46
    %92 = vmatprep.subr.mxu0 0.0
    %93 = vmatpush1.msra.mxu0 %v45
    %94 = vmatprep.subr.mxu0 0.0
    %95 = vmatpush1.msra.mxu0 %v44
    %96 = vmatprep.subr.mxu0 0.0
    %97 = vmatpush1.msra.mxu0 %v43
    %98 = vmatprep.subr.mxu0 0.0
    %99 = vmatpush1.msra.mxu0 %v42
    %100 = vmatprep.subr.mxu0 0.0
    %101 = vmatpush1.msra.mxu0 %v41
    %102 = vmatprep.subr.mxu0 0.0
    %103 = vmatpush1.msra.mxu0 %v40
    %104 = vmatprep.subr.mxu0 0.0
    %105 = vmatpush2.msra.mxu0 %v71
    %106 = vmatprep.subr.mxu0 0.0
    %107 = vmatpush2.msra.mxu0 %v70
    %108 = vmatprep.subr.mxu0 0.0
    %109 = vmatpush2.msra.mxu0 %v69
    %110 = vmatprep.subr.mxu0 0.0
    %111 = vmatpush2.msra.mxu0 %v68
    %112 = vmatprep.subr.mxu0 0.0
    %113 = vmatpush2.msra.mxu0 %v67
    %114 = vmatprep.subr.mxu0 0.0
    %115 = vmatpush2.msra.mxu0 %v66
    %116 = vmatprep.subr.mxu0 0.0
    %117 = vmatpush2.msra.mxu0 %v65
    %118 = vmatprep.subr.mxu0 0.0
    %119 = vmatpush2.msra.mxu0 %v64
    %120 = vmatprep.subr.mxu0 0.0
    %121 = vmatpush2.msra.mxu0 %v63
    %122 = vmatprep.subr.mxu0 0.0
    %123 = vmatpush2.msra.mxu0 %v62
    %124 = vmatprep.subr.mxu0 0.0
    %125 = vmatpush2.msra.mxu0 %v61
    %126 = vmatprep.subr.mxu0 0.0
    %127 = vmatpush2.msra.mxu0 %v60
    %128 = vmatprep.subr.mxu0 0.0
    %129 = vmatpush2.msra.mxu0 %v59
    %130 = vmatprep.subr.mxu0 0.0
    %131 = vmatpush2.msra.mxu0 %v58
    %132 = vmatprep.subr.mxu0 0.0
    %133 = vmatpush2.msra.mxu0 %v57
    %134 = vmatprep.subr.mxu0 0.0
    %135 = vmatpush2.msra.mxu0 %v56
    %136 = vmatprep.mubr.f32.mxu0 %v39
    %137 = vmatmul.mubr.f32.gmra.mxu0 %v38
    %v138 = vpop.f32.mrf.mxu0
    %v139 = vadd.f32 0.0, %v138
    %v140 = vpop.f32.mrf.mxu0
    %141 = vdwg.mxu0
    %v142 = vld [vmem:[#allocation2] sm:$0xff]
    %vm143 = vcmask 523264
    %v144 = vsel %vm143, %v142, -inf
    %145 = vmax.xlane.f32.xlu0 %v144
    %v146 = vpop.xlane.xlu0 %145
    %vm147 = vcmask 1048064
    %v148 = vsel %vm147, %v142, -inf
    %149 = vmax.xlane.f32.xlu0 %v148
    %v150 = vpop.xlane.xlu0 %149
    %v151 = vsel %vm143, %v39, -inf
    %152 = vmax.xlane.f32.xlu0 %v151
    %v153 = vpop.xlane.xlu0 %152
    %v154 = vsel %vm147, %v39, -inf
    %155 = vmax.xlane.f32.xlu0 %v154
    %v156 = vpop.xlane.xlu0 %155
    %v157 = vmax.f32 %v146, %v150
    %v158 = vmax.f32 %v157, %v153
    %v159 = vmax.f32 %v158, %v156
    %v160 = vmul.f32 %v139, 0.00390625
    %v161 = vadd.f32 %v160, %v159
    %vm162 = vcmask 7168
    %163 = vst.msk [vmem:[#allocation7] sm:$0xff] %vm162, %v161
    %v164 = vmul.f32 %v139, 0.0078125
    %v165 = vadd.f32 %v164, %v157
    %vm166 = vcmask 15368
    %167 = vst.msk [vmem:[#allocation7] sm:$0xff] %vm166, %v165
    %v168 = vmax.f32 %v153, %v156
    %v169 = vadd.f32 %v164, %v168
    %vm170 = vcmask 23568
    %171 = vst.msk [vmem:[#allocation7] sm:$0xff] %vm170, %v169
    %v172 = vmul.f32 %v139, 0.015625
    %v173 = vadd.f32 %v172, %v146
    %vm174 = vcmask 31768
    %175 = vst.msk [vmem:[#allocation7] sm:$0xff] %vm174, %v173
    %v176 = vadd.f32 %v172, %v150
    %vm177 = vcmask 39968
    %178 = vst.msk [vmem:[#allocation7] sm:$0xff] %vm177, %v176
    %v179 = vadd.f32 %v172, %v153
    %vm180 = vcmask 48168
    %181 = vst.msk [vmem:[#allocation7] sm:$0xff] %vm180, %v179
    %v182 = vadd.f32 %v172, %v156
    %vm183 = vcmask 56368
    %184 = vst.msk [vmem:[#allocation7] sm:$0xff] %vm183, %v182
    // Predicated region
    $region18: #{tpu_custom_call.1} parent=1 // pred_check
      _
    $region19: #{tpu_custom_call.1} parent=1 // pred_check_branch
      %186 = sbr.rel (0) target = $region21
    $region20: #{tpu_custom_call.1} parent=1 // pred_region
      %s188 = ssub.s32 128, 128
      %189 = vsyncadd [#allocation4], %s188
      %s191 = sshll.u32 [#allocation7], 4
      %s192 = int_to_ptr.vmem [resolvable:$true] %s191
      %194 = dma.vmem_to_hbm [thread:$0]  %s192, 128, %s2, [#allocation4]
    $region21: #{tpu_custom_call.1} parent=1 // pred_fallthru
      _
    // Predicated region
    $region22: #{tpu_custom_call.1} parent=1 // pred_check
      _
    $region23: #{tpu_custom_call.1} parent=1 // pred_check_branch
      %196 = sbr.rel (0) target = $region25
    $region24: #{tpu_custom_call.1} parent=1 // pred_region
      %197 = dma.done [#allocation4], 128
    $region25: #{tpu_custom_call.1} parent=1 // pred_fallthru
      _
    %198 = vsyncpa [#allocation3], 1
    %199 = vsyncpa [#allocation6], 1
    %200 = vsyncpa [#allocation4], 1

</llo_original>
